<compile_context>
chip_gen: v6e
topology: v6e:2x2x1
jax: 0.10.0
libtpu: 0.0.40
codegen_flags: <defaults>
</compile_context>

<pallas_src>
import jax
import jax.numpy as jnp
from jax.experimental import pallas as pl
from jax.experimental.pallas import tpu as pltpu


def _pt_module_kernel(x_ref, bias_ref, o_ref):
    # bias_ref is (block_rows, 1): broadcasts across the lane dimension.
    # (x + 2) * 3 / 4 + chan  ==  x * 0.75 + (chan + 1.5)
    o_ref[...] = x_ref[...] * 0.75 + bias_ref[...]


def _per_buffer_cap_bytes():
    """Generation-aware per-buffer VMEM block cap."""
    try:
        kind = jax.devices()[0].device_kind.lower()
    except Exception:
        kind = ""
    if "v6" in kind:
        # v6e: 32 MiB scoped default / 128 MiB physical -> larger blocks OK.
        return 6 * 1024 * 1024
    # Safe everywhere: v5e 16 MiB scoped default, v7x 64 MiB physical VMEM.
    return 3 * 1024 * 1024


def pt_module_forward(x):
    """Pallas implementation of PtModule.forward for NCHW float input."""
    n, c, h, w = x.shape
    rows, cols = n * c, h * w
    x2 = x.reshape(rows, cols)  # lane-dense 2D view (cols = H*W)
    # TODO(synk): if H*W is not a multiple of 128, a factorization folding C or
    # N into the lane dim would avoid masked partial stores.

    # Precompute the per-row (= per NC pair) channel bias once, with the +1.5
    # constant folded in. Shape (rows, 1): tiny side input, broadcast on lanes.
    chan = (jnp.arange(rows, dtype=jnp.int32) % c).astype(x.dtype)
    bias = (chan + jnp.asarray(1.5, dtype=x.dtype)).reshape(rows, 1)

    itemsize = jnp.dtype(x.dtype).itemsize
    cap_bytes = _per_buffer_cap_bytes()
    if rows % 8 == 0 and rows >= 16:
        max_rows = max(8, ((cap_bytes // max(1, cols * itemsize)) // 8) * 8)
        # Aim for >= 2 grid steps so v7x's second TensorCore gets work.
        half = ((rows // 2 + 7) // 8) * 8
        block_rows = max(8, min(rows, max_rows, half))
    else:
        # Small / non-8-aligned row count: one full block (full-dim is legal).
        block_rows = rows
    grid = (pl.cdiv(rows, block_rows),)

    out2 = pl.pallas_call(
        _pt_module_kernel,
        out_shape=jax.ShapeDtypeStruct((rows, cols), x.dtype),
        grid=grid,
        in_specs=[
            pl.BlockSpec((block_rows, cols), lambda i: (i, 0)),
            pl.BlockSpec((block_rows, 1), lambda i: (i, 0)),
        ],
        out_specs=pl.BlockSpec((block_rows, cols), lambda i: (i, 0)),
        input_output_aliases={0: 0},
        compiler_params=pltpu.CompilerParams(
            dimension_semantics=("parallel",)),
    )(x2, bias)
    return out2.reshape(n, c, h, w)


def _reference(x):
    # Literal PyTorch semantics.
    y = (x + 2.0) * 3.0 / 4.0
    chan = jnp.arange(x.shape[1], dtype=x.dtype).reshape(1, -1, 1, 1)
    return y + chan


if __name__ == "__main__":
    key = jax.random.PRNGKey(0)
    x = jax.random.normal(key, (2, 4, 16, 16), dtype=jnp.float32)

    ref = _reference(x)  # compute reference first (kernel may alias its input)
    out = jax.block_until_ready(pt_module_forward(x))

    assert out.shape == x.shape
    assert jnp.allclose(out, ref, atol=1e-5, rtol=1e-6), "mismatch vs reference"
    print("KERNEL_OK")
</pallas_src>

<mosaic_0001>
module attributes {stable_mosaic.version = 11 : i64} {
  func.func @_pt_module_kernel(%arg0: i32, %arg1: memref<8x256xf32, #tpu.memory_space<vmem>>, %arg2: memref<8x1xf32, #tpu.memory_space<vmem>>, %arg3: memref<8x256xf32, #tpu.memory_space<vmem>>) attributes {dimension_semantics = [#tpu.dimension_semantics<parallel>], iteration_bounds = array<i64: 1>, scalar_prefetch = 0 : i64, scratch_operands = 0 : i64, tpu.core_type = #tpu.core_type<tc>, window_params = [{transform_indices = @transform_0, window_bounds = array<i64: 8, 256>}, {transform_indices = @transform_1, window_bounds = array<i64: 8, 1>}, {transform_indices = @transform_2, window_bounds = array<i64: 8, 256>}]} {
    %c0 = arith.constant 0 : index
    %c0_0 = arith.constant 0 : index
    %0 = vector.load %arg1[%c0, %c0_0] : memref<8x256xf32, #tpu.memory_space<vmem>>, vector<8x256xf32>
    %cst = arith.constant 7.500000e-01 : f32
    %1 = vector.broadcast %cst : f32 to vector<8x256xf32>
    %2 = arith.mulf %0, %1 : vector<8x256xf32>
    %c0_1 = arith.constant 0 : index
    %c0_2 = arith.constant 0 : index
    %3 = vector.load %arg2[%c0_1, %c0_2] : memref<8x1xf32, #tpu.memory_space<vmem>>, vector<8x1xf32>
    %4 = vector.broadcast %3 : vector<8x1xf32> to vector<8x256xf32>
    %5 = arith.addf %2, %4 : vector<8x256xf32>
    %c0_3 = arith.constant 0 : index
    %c0_4 = arith.constant 0 : index
    %6 = vector.load %arg3[%c0_3, %c0_4] : memref<8x256xf32, #tpu.memory_space<vmem>>, vector<8x256xf32>
    tpu.vector_store %arg3[%c0_3, %c0_4], %5 {strides = array<i32>} : memref<8x256xf32, #tpu.memory_space<vmem>>, vector<8x256xf32>,
    return
  }
  func.func @transform_0(%arg0: i32) -> (i32, i32) {
    %c0_i32 = arith.constant 0 : i32
    %c0_i32_0 = arith.constant 0 : i32
    return %arg0, %c0_i32 : i32, i32
  }
  func.func @transform_1(%arg0: i32) -> (i32, i32) {
    %c0_i32 = arith.constant 0 : i32
    %c0_i32_0 = arith.constant 0 : i32
    return %arg0, %c0_i32 : i32, i32
  }
  func.func @transform_2(%arg0: i32) -> (i32, i32) {
    %c0_i32 = arith.constant 0 : i32
    %c0_i32_0 = arith.constant 0 : i32
    return %arg0, %c0_i32 : i32, i32
  }
}

</mosaic_0001>

<llo_original>
// kernel: tpu_custom_call.1
$region0: #{tpu_custom_call.1}
  #allocation0 [shape = 'u32[]', space=smem, size = 0x4, offset = 0x4, fixed_abs, tag = 'smem constant byte address 0x4 - core index']
  #allocation1 [shape = 'u32[144,128]{1,0:T(1,128)}', space=vmem, size = 0x12000, scoped, tag = 'internal scratch']
  %s0 = inlined_call_operand.hbm [shape: f32[8,256], index: 0, kind: input, shape index: {}, may-alias: {0,2}]
  %s1 = inlined_call_operand.vmem [shape: f32[8,1], index: 1, kind: input, shape index: {}]
  %s2 = inlined_call_operand.hbm [shape: f32[8,256], index: 2, kind: output, shape index: {}, may-alias: {0,2}]
  %s3 = sld [smem:[#allocation0]]
  $region22: #{tpu_custom_call.1} parent=0
    _
  %s5 = ssub.s32 1, %s3
  %s6 = scalar_select 0, %s5, %s3
  $region1: #{tpu_custom_call.1} parent=0
    #allocation2 [shape = 'u8[8192]{0}', space=vmem, size = 0x2000, scoped, tag = 'input window, operand 0, single buffered']
    #allocation3 [shape = 's32[1]{0}', space=sflag, size = 0x4, scoped, tag = 'scoped memory for tpu_custom_call.1']
    #allocation4 [shape = 's32[1]{0}', space=sflag, size = 0x4, scoped, tag = 'scoped memory for tpu_custom_call.1']
    #allocation5 [shape = 'u8[8192]{0}', space=vmem, size = 0x2000, scoped, tag = 'output window, operand 0, single buffered']
    %7 = vsyncpa [#allocation3], 0
    %8 = vsyncpa [#allocation4], 0
    // Predicated region
    $region2: #{tpu_custom_call.1} parent=1 // pred_check
      _
    $region3: #{tpu_custom_call.1} parent=1 // pred_check_branch
      %10 = sbr.rel (0) target = $region5
    $region4: #{tpu_custom_call.1} parent=1 // pred_region
      %s12 = ssub.s32 256, 256
      %13 = vsyncadd [#allocation3], %s12
      %s15 = sshll.u32 [#allocation2], 4
      %s16 = int_to_ptr.vmem [resolvable:$true] %s15
      %18 = dma.hbm_to_vmem [thread:$0]  %s0, 256, %s16, [#allocation3]
    $region5: #{tpu_custom_call.1} parent=1 // pred_fallthru
      _
    // Predicated region
    $region6: #{tpu_custom_call.1} parent=1 // pred_check
      _
    $region7: #{tpu_custom_call.1} parent=1 // pred_check_branch
      %20 = sbr.rel (0) target = $region9
    $region8: #{tpu_custom_call.1} parent=1 // pred_region
      _
    $region9: #{tpu_custom_call.1} parent=1 // pred_fallthru
      _
    // Predicated region
    $region10: #{tpu_custom_call.1} parent=1 // pred_check
      _
    $region11: #{tpu_custom_call.1} parent=1 // pred_check_branch
      %22 = sbr.rel (0) target = $region13
    $region12: #{tpu_custom_call.1} parent=1 // pred_region
      %23 = dma.done [#allocation3], 256
    $region13: #{tpu_custom_call.1} parent=1 // pred_fallthru
      _
    %v24 = vld [vmem:[#allocation2] sm:$0xff]
    %v25 = vld [vmem:[#allocation2 + $0x8] sm:$0xff]
    %v26 = vmul.f32 %v24, 0.75
    %v27 = vmul.f32 %v25, 0.75
    %v28 = vld [vmem:[%s1] sm:$0xff]
    %30 = vset.pattern.permute.xlu0 0
    %31 = vperm.xlu0 %30, %v28
    %v32 = vpop.permute.xlu0 %31
    %v34 = vadd.f32 %v26, %v32
    %v35 = vadd.f32 %v27, %v32
    %36 = vst [vmem:[#allocation5] sm:$0xff] %v34
    %37 = vst [vmem:[#allocation5 + $0x8] sm:$0xff] %v35
    // Predicated region
    $region14: #{tpu_custom_call.1} parent=1 // pred_check
      _
    $region15: #{tpu_custom_call.1} parent=1 // pred_check_branch
      %39 = sbr.rel (0) target = $region17
    $region16: #{tpu_custom_call.1} parent=1 // pred_region
      %s41 = ssub.s32 256, 256
      %42 = vsyncadd [#allocation4], %s41
      %s44 = sshll.u32 [#allocation5], 4
      %s45 = int_to_ptr.vmem [resolvable:$true] %s44
      %47 = dma.vmem_to_hbm [thread:$0]  %s45, 256, %s2, [#allocation4]
    $region17: #{tpu_custom_call.1} parent=1 // pred_fallthru
      _
    // Predicated region
    $region18: #{tpu_custom_call.1} parent=1 // pred_check
      _
    $region19: #{tpu_custom_call.1} parent=1 // pred_check_branch
      %49 = sbr.rel (0) target = $region21
    $region20: #{tpu_custom_call.1} parent=1 // pred_region
      %50 = dma.done [#allocation4], 256
    $region21: #{tpu_custom_call.1} parent=1 // pred_fallthru
      _
    %51 = vsyncpa [#allocation3], 1
    %52 = vsyncpa [#allocation4], 1

</llo_original>
